<compile_context>
chip_gen: v5e
topology: v5e:2x2
jax: 0.10.0
libtpu: 0.0.40
codegen_flags: <defaults>
</compile_context>

<pallas_src>
import jax
import jax.numpy as jnp
from jax.experimental import pallas as pl
from jax.experimental.pallas import tpu as pltpu

FEATURES = [
    'KMeans Silhouette Score', 'KMeans CH Score', 'KMeans DB Score',
    'DBSCAN Silhouette Score', 'DBSCAN CH Score', 'DBSCAN DB Score',
    'GMM Silhouette Score', 'GMM CH Score', 'GMM DB Score',
    'BIRCH Silhouette Score', 'BIRCH CH Score', 'BIRCH DB Score',
    'Agglomerative Silhouette Score', 'Agglomerative CH Score',
    'Agglomerative DB Score', 'KMedoids Silhouette Score',
    'KMedoids CH Score', 'KMedoids DB Score', 'OPTICS Silhouette Score',
    'OPTICS CH Score', 'OPTICS DB Score',
]
INPUT_DIM = len(FEATURES)  # 21
H1, H2, OUT = 64, 32, 1


def _round_up(n, m):
    return ((n + m - 1) // m) * m


def _mlp_kernel(x_ref, w1_ref, b1_ref, w2_ref, b2_ref, w3_ref, b3_ref, o_ref):
    # fc1 + ReLU  (MXU matmul, f32 accumulate)
    h1 = jnp.dot(x_ref[...], w1_ref[...], preferred_element_type=jnp.float32)
    h1 = jnp.maximum(h1 + b1_ref[...], 0.0)
    # fc2 + ReLU
    h2 = jnp.dot(h1, w2_ref[...], preferred_element_type=jnp.float32)
    h2 = jnp.maximum(h2 + b2_ref[...], 0.0)
    # fc3 (K=32, N=1): VPU multiply + lane reduction (avoids an N=1 MXU matmul)
    z3 = jnp.sum(h2 * w3_ref[...], axis=-1, keepdims=True) + b3_ref[...]  # (TM, 1)
    # Sigmoid: exp on EUP + reciprocal.
    p = pl.reciprocal(1.0 + jnp.exp(-z3), approx=False)
    o_ref[...] = p.astype(o_ref.dtype)


def simple_mlp_forward(x, params, *, block_m=2048):
    """x: (B, INPUT_DIM) float32. Returns (B, 1) float32 in [0, 1]."""
    w1, b1, w2, b2, w3, b3 = params
    B = x.shape[0]

    # Row tile: multiple of 128, clamped for small batches. 2048x21 f32 tile
    # is ~168 KiB (x2 for double buffering) -> far under scoped VMEM limits on
    # v5e / v6e / v7x.
    tm = min(_round_up(block_m, 128), _round_up(B, 128))
    b_pad = _round_up(B, tm)
    if b_pad != B:
        x = jnp.pad(x, ((0, b_pad - B), (0, 0)))

    x = x.astype(jnp.float32)
    w1f = w1.astype(jnp.float32)                     # (21, 64)
    b1f = b1.reshape(1, H1).astype(jnp.float32)      # (1, 64)
    w2f = w2.astype(jnp.float32)                     # (64, 32)
    b2f = b2.reshape(1, H2).astype(jnp.float32)      # (1, 32)
    w3f = w3.reshape(1, H2).astype(jnp.float32)      # (1, 32) row for VPU broadcast
    b3f = b3.reshape(1, 1).astype(jnp.float32)       # (1, 1)

    def resident(shape):
        nd = len(shape)
        return pl.BlockSpec(shape, lambda i, _nd=nd: (0,) * _nd)

    grid = (pl.cdiv(b_pad, tm),)

    out = pl.pallas_call(
        _mlp_kernel,
        out_shape=jax.ShapeDtypeStruct((b_pad, OUT), jnp.float32),
        grid=grid,
        in_specs=[
            pl.BlockSpec((tm, INPUT_DIM), lambda i: (i, 0)),  # x: batch-tiled
            resident(w1f.shape), resident(b1f.shape),         # VMEM-resident params
            resident(w2f.shape), resident(b2f.shape),
            resident(w3f.shape), resident(b3f.shape),
        ],
        out_specs=pl.BlockSpec((tm, OUT), lambda i: (i, 0)),
        compiler_params=pltpu.CompilerParams(
            dimension_semantics=("parallel",),   # megacore sharding on v7x
        ),
    )(x, w1f, b1f, w2f, b2f, w3f, b3f)

    return out[:B]


def init_params(key):
    """Deterministic synthetic parameter init (PyTorch-like uniform bounds).

    Weights stored as (in, out) — transpose of nn.Linear's (out, in) — so the
    kernel computes y = x @ W + b directly.
    """
    ks = jax.random.split(key, 6)

    def linear_init(kw, kb, fan_in, fan_out):
        bound = 1.0 / jnp.sqrt(float(fan_in))
        w = jax.random.uniform(kw, (fan_in, fan_out), jnp.float32, -bound, bound)
        b = jax.random.uniform(kb, (1, fan_out), jnp.float32, -bound, bound)
        return w, b

    w1, b1 = linear_init(ks[0], ks[1], INPUT_DIM, H1)
    w2, b2 = linear_init(ks[2], ks[3], H1, H2)
    w3, b3 = linear_init(ks[4], ks[5], H2, OUT)
    return (w1, b1, w2, b2, w3, b3)


def reference_forward(x, params):
    """Pure-JAX f32 reference, mirroring the PyTorch module."""
    w1, b1, w2, b2, w3, b3 = params
    h1 = jnp.maximum(jnp.dot(x, w1) + b1.reshape(1, -1), 0.0)
    h2 = jnp.maximum(jnp.dot(h1, w2) + b2.reshape(1, -1), 0.0)
    z3 = jnp.dot(h2, w3.reshape(H2, OUT)) + b3.reshape(1, OUT)
    return 1.0 / (1.0 + jnp.exp(-z3))


if __name__ == "__main__":
    key = jax.random.PRNGKey(0)
    k_params, k_x = jax.random.split(key)
    params = init_params(k_params)

    batch = 8
    x = jax.random.normal(k_x, (batch, INPUT_DIM), dtype=jnp.float32)

    fwd = jax.jit(simple_mlp_forward)
    out = fwd(x, params)
    out = jax.block_until_ready(out)

    ref = reference_forward(x, params)
    assert out.shape == (batch, OUT)
    assert bool(jnp.all(jnp.isfinite(out)))
    assert jnp.allclose(out, ref, atol=1e-4, rtol=1e-4), (out, ref)

    print("KERNEL_OK")
</pallas_src>

<mosaic_0001>
module attributes {stable_mosaic.version = 11 : i64} {
  func.func @_mlp_kernel(%arg0: i32, %arg1: memref<128x21xf32, #tpu.memory_space<vmem>>, %arg2: memref<21x64xf32, #tpu.memory_space<vmem>>, %arg3: memref<1x64xf32, #tpu.memory_space<vmem>>, %arg4: memref<64x32xf32, #tpu.memory_space<vmem>>, %arg5: memref<1x32xf32, #tpu.memory_space<vmem>>, %arg6: memref<1x32xf32, #tpu.memory_space<vmem>>, %arg7: memref<1x1xf32, #tpu.memory_space<vmem>>, %arg8: memref<128x1xf32, #tpu.memory_space<vmem>>) attributes {dimension_semantics = [#tpu.dimension_semantics<parallel>], iteration_bounds = array<i64: 1>, scalar_prefetch = 0 : i64, scratch_operands = 0 : i64, tpu.core_type = #tpu.core_type<tc>, window_params = [{transform_indices = @transform_0, window_bounds = array<i64: 128, 21>}, {pipeline_mode = #tpu.pipeline_mode<synchronous>, transform_indices = @transform_1, window_bounds = array<i64: 21, 64>}, {pipeline_mode = #tpu.pipeline_mode<synchronous>, transform_indices = @transform_2, window_bounds = array<i64: 1, 64>}, {pipeline_mode = #tpu.pipeline_mode<synchronous>, transform_indices = @transform_3, window_bounds = array<i64: 64, 32>}, {pipeline_mode = #tpu.pipeline_mode<synchronous>, transform_indices = @transform_4, window_bounds = array<i64: 1, 32>}, {pipeline_mode = #tpu.pipeline_mode<synchronous>, transform_indices = @transform_5, window_bounds = array<i64: 1, 32>}, {pipeline_mode = #tpu.pipeline_mode<synchronous>, transform_indices = @transform_6, window_bounds = array<i64: 1, 1>}, {transform_indices = @transform_7, window_bounds = array<i64: 128, 1>}]} {
    %c0 = arith.constant 0 : index
    %c0_0 = arith.constant 0 : index
    %0 = vector.load %arg1[%c0, %c0_0] : memref<128x21xf32, #tpu.memory_space<vmem>>, vector<128x21xf32>
    %c0_1 = arith.constant 0 : index
    %c0_2 = arith.constant 0 : index
    %1 = vector.load %arg2[%c0_1, %c0_2] : memref<21x64xf32, #tpu.memory_space<vmem>>, vector<21x64xf32>
    %cst = arith.constant dense<0.000000e+00> : vector<128x64xf32>
    %2 = tpu.matmul %0, %1, %cst {dimension_numbers = #tpu.dot_dimension_numbers<[1], [0], [0], [1], [0, 0, 1, 1], [], []>} : vector<128x21xf32>, vector<21x64xf32>, vector<128x64xf32> -> vector<128x64xf32>
    %c0_3 = arith.constant 0 : index
    %c0_4 = arith.constant 0 : index
    %3 = vector.load %arg3[%c0_3, %c0_4] : memref<1x64xf32, #tpu.memory_space<vmem>>, vector<1x64xf32>
    %4 = vector.broadcast %3 : vector<1x64xf32> to vector<128x64xf32>
    %5 = arith.addf %2, %4 : vector<128x64xf32>
    %cst_5 = arith.constant 0.000000e+00 : f32
    %6 = vector.broadcast %cst_5 : f32 to vector<128x64xf32>
    %7 = arith.maximumf %5, %6 : vector<128x64xf32>
    %c0_6 = arith.constant 0 : index
    %c0_7 = arith.constant 0 : index
    %8 = vector.load %arg4[%c0_6, %c0_7] : memref<64x32xf32, #tpu.memory_space<vmem>>, vector<64x32xf32>
    %cst_8 = arith.constant dense<0.000000e+00> : vector<128x32xf32>
    %9 = tpu.matmul %7, %8, %cst_8 {dimension_numbers = #tpu.dot_dimension_numbers<[1], [0], [0], [1], [0, 0, 1, 1], [], []>} : vector<128x64xf32>, vector<64x32xf32>, vector<128x32xf32> -> vector<128x32xf32>
    %c0_9 = arith.constant 0 : index
    %c0_10 = arith.constant 0 : index
    %10 = vector.load %arg5[%c0_9, %c0_10] : memref<1x32xf32, #tpu.memory_space<vmem>>, vector<1x32xf32>
    %11 = vector.broadcast %10 : vector<1x32xf32> to vector<128x32xf32>
    %12 = arith.addf %9, %11 : vector<128x32xf32>
    %cst_11 = arith.constant 0.000000e+00 : f32
    %13 = vector.broadcast %cst_11 : f32 to vector<128x32xf32>
    %14 = arith.maximumf %12, %13 : vector<128x32xf32>
    %c0_12 = arith.constant 0 : index
    %c0_13 = arith.constant 0 : index
    %15 = vector.load %arg6[%c0_12, %c0_13] : memref<1x32xf32, #tpu.memory_space<vmem>>, vector<1x32xf32>
    %16 = vector.broadcast %15 : vector<1x32xf32> to vector<128x32xf32>
    %17 = arith.mulf %14, %16 : vector<128x32xf32>
    %cst_14 = arith.constant dense<0.000000e+00> : vector<128xf32>
    %18 = vector.multi_reduction <add>, %17, %cst_14 [1] : vector<128x32xf32> to vector<128xf32>
    %19 = vector.shape_cast %18 : vector<128xf32> to vector<128x1xf32>
    %c0_15 = arith.constant 0 : index
    %c0_16 = arith.constant 0 : index
    %20 = vector.load %arg7[%c0_15, %c0_16] : memref<1x1xf32, #tpu.memory_space<vmem>>, vector<1x1xf32>
    %21 = vector.broadcast %20 : vector<1x1xf32> to vector<128x1xf32>
    %22 = arith.addf %19, %21 : vector<128x1xf32>
    %cst_17 = arith.constant 0.000000e+00 : f32
    %23 = vector.broadcast %cst_17 : f32 to vector<128x1xf32>
    %24 = arith.subf %23, %22 : vector<128x1xf32>
    %25 = math.exp %24 : vector<128x1xf32>
    %cst_18 = arith.constant 1.000000e+00 : f32
    %26 = vector.broadcast %cst_18 : f32 to vector<128x1xf32>
    %27 = arith.addf %26, %25 : vector<128x1xf32>
    %28 = tpu.reciprocal %27 : vector<128x1xf32> -> vector<128x1xf32>
    %c0_19 = arith.constant 0 : index
    %c0_20 = arith.constant 0 : index
    %29 = vector.load %arg8[%c0_19, %c0_20] : memref<128x1xf32, #tpu.memory_space<vmem>>, vector<128x1xf32>
    tpu.vector_store %arg8[%c0_19, %c0_20], %28 {strides = array<i32>} : memref<128x1xf32, #tpu.memory_space<vmem>>, vector<128x1xf32>,
    return
  }
  func.func @transform_0(%arg0: i32) -> (i32, i32) {
    %c0_i32 = arith.constant 0 : i32
    %c0_i32_0 = arith.constant 0 : i32
    return %arg0, %c0_i32 : i32, i32
  }
  func.func @transform_1(%arg0: i32) -> (i32, i32) {
    %c0_i32 = arith.constant 0 : i32
    %c0_i32_0 = arith.constant 0 : i32
    %c0_i32_1 = arith.constant 0 : i32
    return %c0_i32, %c0_i32_0 : i32, i32
  }
  func.func @transform_2(%arg0: i32) -> (i32, i32) {
    %c0_i32 = arith.constant 0 : i32
    %c0_i32_0 = arith.constant 0 : i32
    %c0_i32_1 = arith.constant 0 : i32
    return %c0_i32, %c0_i32_0 : i32, i32
  }
  func.func @transform_3(%arg0: i32) -> (i32, i32) {
    %c0_i32 = arith.constant 0 : i32
    %c0_i32_0 = arith.constant 0 : i32
    %c0_i32_1 = arith.constant 0 : i32
    return %c0_i32, %c0_i32_0 : i32, i32
  }
  func.func @transform_4(%arg0: i32) -> (i32, i32) {
    %c0_i32 = arith.constant 0 : i32
    %c0_i32_0 = arith.constant 0 : i32
    %c0_i32_1 = arith.constant 0 : i32
    return %c0_i32, %c0_i32_0 : i32, i32
  }
  func.func @transform_5(%arg0: i32) -> (i32, i32) {
    %c0_i32 = arith.constant 0 : i32
    %c0_i32_0 = arith.constant 0 : i32
    %c0_i32_1 = arith.constant 0 : i32
    return %c0_i32, %c0_i32_0 : i32, i32
  }
  func.func @transform_6(%arg0: i32) -> (i32, i32) {
    %c0_i32 = arith.constant 0 : i32
    %c0_i32_0 = arith.constant 0 : i32
    %c0_i32_1 = arith.constant 0 : i32
    return %c0_i32, %c0_i32_0 : i32, i32
  }
  func.func @transform_7(%arg0: i32) -> (i32, i32) {
    %c0_i32 = arith.constant 0 : i32
    %c0_i32_0 = arith.constant 0 : i32
    return %arg0, %c0_i32 : i32, i32
  }
}

</mosaic_0001>

<llo_original>
// kernel: simple_mlp_forward.1
$region0: #{simple_mlp_forward.1}
  #allocation0 [shape = 'u32[]', space=smem, size = 0x4, offset = 0x4, fixed_abs, tag = 'smem constant byte address 0x4 - core index']
  #allocation1 [shape = 'u32[72,128]{1,0:T(1,128)}', space=vmem, size = 0x9000, scoped, tag = 'internal scratch']
  #allocation2 [shape = 'f32[1,1]{1,0:T(1,128)S(1)}', space=vmem, size = 0x200, scoped, tag = 'scoped memory for simple_mlp_forward.1']
  %s0 = inlined_call_operand.vmem [shape: f32[128,21], index: 0, kind: input, shape index: {}]
  %s1 = inlined_call_operand.vmem [shape: f32[21,64], index: 1, kind: input, shape index: {}]
  %s2 = inlined_call_operand.vmem [shape: f32[1,64], index: 2, kind: input, shape index: {}]
  %s3 = inlined_call_operand.vmem [shape: f32[64,32], index: 3, kind: input, shape index: {}]
  %s4 = inlined_call_operand.vmem [shape: f32[1,32], index: 4, kind: input, shape index: {}]
  %s5 = inlined_call_operand.vmem [shape: f32[1,32], index: 5, kind: input, shape index: {}]
  %s6 = inlined_call_operand.<no memory space> [shape: f32[1,1], index: 6, kind: input, shape index: {}]
  %s7 = inlined_call_operand.vmem [shape: f32[128,1], index: 7, kind: output, shape index: {}]
  %s8 = sld [smem:[#allocation0]]
  $region38: #{simple_mlp_forward.1} parent=0
    _
  %s10 = ssub.s32 1, %s8
  %s11 = scalar_select 0, %s10, %s8
  %v12 = vstv %s6
  %13 = vst [vmem:[#allocation2] sm:$0x1] %v12
  // Predicated region
  $region2: #{simple_mlp_forward.1} parent=0 // pred_check
    _
  $region3: #{simple_mlp_forward.1} parent=0 // pred_check_branch
    %15 = sbr.rel (0) target = $region5
  $region4: #{simple_mlp_forward.1} parent=0 // pred_region
    _
  $region5: #{simple_mlp_forward.1} parent=0 // pred_fallthru
    _
  // Predicated region
  $region6: #{simple_mlp_forward.1} parent=0 // pred_check
    _
  $region7: #{simple_mlp_forward.1} parent=0 // pred_check_branch
    %17 = sbr.rel (0) target = $region9
  $region8: #{simple_mlp_forward.1} parent=0 // pred_region
    _
  $region9: #{simple_mlp_forward.1} parent=0 // pred_fallthru
    _
  // Predicated region
  $region10: #{simple_mlp_forward.1} parent=0 // pred_check
    _
  $region11: #{simple_mlp_forward.1} parent=0 // pred_check_branch
    %19 = sbr.rel (0) target = $region13
  $region12: #{simple_mlp_forward.1} parent=0 // pred_region
    _
  $region13: #{simple_mlp_forward.1} parent=0 // pred_fallthru
    _
  // Predicated region
  $region14: #{simple_mlp_forward.1} parent=0 // pred_check
    _
  $region15: #{simple_mlp_forward.1} parent=0 // pred_check_branch
    %21 = sbr.rel (0) target = $region17
  $region16: #{simple_mlp_forward.1} parent=0 // pred_region
    _
  $region17: #{simple_mlp_forward.1} parent=0 // pred_fallthru
    _
  // Predicated region
  $region18: #{simple_mlp_forward.1} parent=0 // pred_check
    _
  $region19: #{simple_mlp_forward.1} parent=0 // pred_check_branch
    %23 = sbr.rel (0) target = $region21
  $region20: #{simple_mlp_forward.1} parent=0 // pred_region
    _
  $region21: #{simple_mlp_forward.1} parent=0 // pred_fallthru
    _
  // Predicated region
  $region22: #{simple_mlp_forward.1} parent=0 // pred_check
    _
  $region23: #{simple_mlp_forward.1} parent=0 // pred_check_branch
    %25 = sbr.rel (0) target = $region25
  $region24: #{simple_mlp_forward.1} parent=0 // pred_region
    _
  $region25: #{simple_mlp_forward.1} parent=0 // pred_fallthru
    _
  // Predicated region
  $region26: #{simple_mlp_forward.1} parent=0 // pred_check
    _
  $region27: #{simple_mlp_forward.1} parent=0 // pred_check_branch
    %27 = sbr.rel (0) target = $region29
  $region28: #{simple_mlp_forward.1} parent=0 // pred_region
    _
  $region29: #{simple_mlp_forward.1} parent=0 // pred_fallthru
    _
  %v28 = vld [vmem:[%s0] sm:$0xff]
  %v29 = vld [vmem:[%s0 + $0x8] sm:$0xff]
  %v30 = vld [vmem:[%s0 + $0x10] sm:$0xff]
  %v31 = vld [vmem:[%s0 + $0x18] sm:$0xff]
  %v32 = vld [vmem:[%s0 + $0x20] sm:$0xff]
  %v33 = vld [vmem:[%s0 + $0x28] sm:$0xff]
  %v34 = vld [vmem:[%s0 + $0x30] sm:$0xff]
  %v35 = vld [vmem:[%s0 + $0x38] sm:$0xff]
  %v36 = vld [vmem:[%s0 + $0x40] sm:$0xff]
  %v37 = vld [vmem:[%s0 + $0x48] sm:$0xff]
  %v38 = vld [vmem:[%s0 + $0x50] sm:$0xff]
  %v39 = vld [vmem:[%s0 + $0x58] sm:$0xff]
  %v40 = vld [vmem:[%s0 + $0x60] sm:$0xff]
  %v41 = vld [vmem:[%s0 + $0x68] sm:$0xff]
  %v42 = vld [vmem:[%s0 + $0x70] sm:$0xff]
  %v43 = vld [vmem:[%s0 + $0x78] sm:$0xff]
  %v44 = vld [vmem:[%s1] sm:$0xff]
  %v45 = vld [vmem:[%s1 + $0x8] sm:$0xff]
  %v46 = vld [vmem:[%s1 + $0x10] sm:$0x1f]
  %v47 = vld [vmem:[%s2] sm:$0x1]
  %v49 = vperm.slane %v47, 0
  %vm51 = vcmask 171008
  %v53 = vsel %vm51, %v28, 0
  %v56 = vsel %vm51, %v29, 0
  %v59 = vsel %vm51, %v30, 0
  %v62 = vsel %vm51, %v31, 0
  %v65 = vsel %vm51, %v32, 0
  %v68 = vsel %vm51, %v33, 0
  %v71 = vsel %vm51, %v34, 0
  %v74 = vsel %vm51, %v35, 0
  %v77 = vsel %vm51, %v36, 0
  %v80 = vsel %vm51, %v37, 0
  %v83 = vsel %vm51, %v38, 0
  %v86 = vsel %vm51, %v39, 0
  %v89 = vsel %vm51, %v40, 0
  %v92 = vsel %vm51, %v41, 0
  %v95 = vsel %vm51, %v42, 0
  %v98 = vsel %vm51, %v43, 0
  %vm100 = vcmask 1044480
  %v102 = vsel %vm100, %v46, 0
  %104 = vmatpush.msra.mxu0 0.0
  %105 = vmatpush.msra.mxu0 0.0
  %106 = vmatpush.msra.mxu0 0.0
  %107 = vmatpush.msra.mxu0 0.0
  %108 = vmatpush.msra.mxu0 0.0
  %109 = vmatpush.msra.mxu0 0.0
  %110 = vmatpush.msra.mxu0 0.0
  %111 = vmatpush.msra.mxu0 0.0
  %112 = vmatpush.msra.mxu0 0.0
  %113 = vmatpush.msra.mxu0 0.0
  %114 = vmatpush.msra.mxu0 0.0
  %115 = vmatpush.msra.mxu0 0.0
  %116 = vmatpush.msra.mxu0 0.0
  %117 = vmatpush.msra.mxu0 %v102
  %118 = vmatpush.msra.mxu0 %v45
  %119 = vmatpush.msra.mxu0 %v44
  %120 = vmatmul.f32.gmra.mxu0 %v53
  %v121 = vpop.f32.mrf.mxu0
  %v122 = vadd.f32 %v49, %v121
  %123 = vmatmul.f32.gmra.mxu0 %v56
  %v124 = vpop.f32.mrf.mxu0
  %v125 = vadd.f32 %v49, %v124
  %126 = vmatmul.f32.gmra.mxu0 %v59
  %v127 = vpop.f32.mrf.mxu0
  %v128 = vadd.f32 %v49, %v127
  %129 = vmatmul.f32.gmra.mxu0 %v62
  %v130 = vpop.f32.mrf.mxu0
  %v131 = vadd.f32 %v49, %v130
  %132 = vmatmul.f32.gmra.mxu0 %v65
  %v133 = vpop.f32.mrf.mxu0
  %v134 = vadd.f32 %v49, %v133
  %135 = vmatmul.f32.gmra.mxu0 %v68
  %v136 = vpop.f32.mrf.mxu0
  %v137 = vadd.f32 %v49, %v136
  %138 = vmatmul.f32.gmra.mxu0 %v71
  %v139 = vpop.f32.mrf.mxu0
  %v140 = vadd.f32 %v49, %v139
  %141 = vmatmul.f32.gmra.mxu0 %v74
  %v142 = vpop.f32.mrf.mxu0
  %v143 = vadd.f32 %v49, %v142
  %144 = vmatmul.f32.gmra.mxu0 %v77
  %v145 = vpop.f32.mrf.mxu0
  %v146 = vadd.f32 %v49, %v145
  %147 = vmatmul.f32.gmra.mxu0 %v80
  %v148 = vpop.f32.mrf.mxu0
  %v149 = vadd.f32 %v49, %v148
  %150 = vmatmul.f32.gmra.mxu0 %v83
  %v151 = vpop.f32.mrf.mxu0
  %v152 = vadd.f32 %v49, %v151
  %153 = vmatmul.f32.gmra.mxu0 %v86
  %v154 = vpop.f32.mrf.mxu0
  %v155 = vadd.f32 %v49, %v154
  %156 = vmatmul.f32.gmra.mxu0 %v89
  %v157 = vpop.f32.mrf.mxu0
  %v158 = vadd.f32 %v49, %v157
  %159 = vmatmul.f32.gmra.mxu0 %v92
  %v160 = vpop.f32.mrf.mxu0
  %v161 = vadd.f32 %v49, %v160
  %162 = vmatmul.f32.gmra.mxu0 %v95
  %v163 = vpop.f32.mrf.mxu0
  %v164 = vadd.f32 %v49, %v163
  %165 = vmatmul.f32.gmra.mxu0 %v98
  %v166 = vpop.f32.mrf.mxu0
  %v167 = vadd.f32 %v49, %v166
  %168 = vdwg.mxu0
  %v169 = vmax.f32 %v122, 0.0
  %v170 = vmax.f32 %v125, 0.0
  %v171 = vmax.f32 %v128, 0.0
  %v172 = vmax.f32 %v131, 0.0
  %v173 = vmax.f32 %v134, 0.0
  %v174 = vmax.f32 %v137, 0.0
  %v175 = vmax.f32 %v140, 0.0
  %v176 = vmax.f32 %v143, 0.0
  %v177 = vmax.f32 %v146, 0.0
  %v178 = vmax.f32 %v149, 0.0
  %v179 = vmax.f32 %v152, 0.0
  %v180 = vmax.f32 %v155, 0.0
  %v181 = vmax.f32 %v158, 0.0
  %v182 = vmax.f32 %v161, 0.0
  %v183 = vmax.f32 %v164, 0.0
  %v184 = vmax.f32 %v167, 0.0
  %v185 = vld [vmem:[%s3] sm:$0xff]
  %v186 = vld [vmem:[%s3 + $0x8] sm:$0xff]
  %v187 = vld [vmem:[%s3 + $0x10] sm:$0xff]
  %v188 = vld [vmem:[%s3 + $0x18] sm:$0xff]
  %v189 = vld [vmem:[%s3 + $0x20] sm:$0xff]
  %v190 = vld [vmem:[%s3 + $0x28] sm:$0xff]
  %v191 = vld [vmem:[%s3 + $0x30] sm:$0xff]
  %v192 = vld [vmem:[%s3 + $0x38] sm:$0xff]
  %v193 = vld [vmem:[%s4] sm:$0x1]
  %v195 = vperm.slane %v193, 0
  %vm197 = vcmask 523264
  %v199 = vsel %vm197, %v169, 0
  %v202 = vsel %vm197, %v170, 0
  %v205 = vsel %vm197, %v171, 0
  %v208 = vsel %vm197, %v172, 0
  %v211 = vsel %vm197, %v173, 0
  %v214 = vsel %vm197, %v174, 0
  %v217 = vsel %vm197, %v175, 0
  %v220 = vsel %vm197, %v176, 0
  %v223 = vsel %vm197, %v177, 0
  %v226 = vsel %vm197, %v178, 0
  %v229 = vsel %vm197, %v179, 0
  %v232 = vsel %vm197, %v180, 0
  %v235 = vsel %vm197, %v181, 0
  %v238 = vsel %vm197, %v182, 0
  %v241 = vsel %vm197, %v183, 0
  %v244 = vsel %vm197, %v184, 0
  %246 = vmatpush.msra.mxu0 0.0
  %247 = vmatpush.msra.mxu0 0.0
  %248 = vmatpush.msra.mxu0 0.0
  %249 = vmatpush.msra.mxu0 0.0
  %250 = vmatpush.msra.mxu0 0.0
  %251 = vmatpush.msra.mxu0 0.0
  %252 = vmatpush.msra.mxu0 0.0
  %253 = vmatpush.msra.mxu0 0.0
  %254 = vmatpush.msra.mxu0 %v192
  %255 = vmatpush.msra.mxu0 %v191
  %256 = vmatpush.msra.mxu0 %v190
  %257 = vmatpush.msra.mxu0 %v189
  %258 = vmatpush.msra.mxu0 %v188
  %259 = vmatpush.msra.mxu0 %v187
  %260 = vmatpush.msra.mxu0 %v186
  %261 = vmatpush.msra.mxu0 %v185
  %262 = vmatmul.f32.gmra.mxu0 %v199
  %v263 = vpop.f32.mrf.mxu0
  %v264 = vadd.f32 %v195, %v263
  %265 = vmatmul.f32.gmra.mxu0 %v202
  %v266 = vpop.f32.mrf.mxu0
  %v267 = vadd.f32 %v195, %v266
  %268 = vmatmul.f32.gmra.mxu0 %v205
  %v269 = vpop.f32.mrf.mxu0
  %v270 = vadd.f32 %v195, %v269
  %271 = vmatmul.f32.gmra.mxu0 %v208
  %v272 = vpop.f32.mrf.mxu0
  %v273 = vadd.f32 %v195, %v272
  %274 = vmatmul.f32.gmra.mxu0 %v211
  %v275 = vpop.f32.mrf.mxu0
  %v276 = vadd.f32 %v195, %v275
  %277 = vmatmul.f32.gmra.mxu0 %v214
  %v278 = vpop.f32.mrf.mxu0
  %v279 = vadd.f32 %v195, %v278
  %280 = vmatmul.f32.gmra.mxu0 %v217
  %v281 = vpop.f32.mrf.mxu0
  %v282 = vadd.f32 %v195, %v281
  %283 = vmatmul.f32.gmra.mxu0 %v220
  %v284 = vpop.f32.mrf.mxu0
  %v285 = vadd.f32 %v195, %v284
  %286 = vmatmul.f32.gmra.mxu0 %v223
  %v287 = vpop.f32.mrf.mxu0
  %v288 = vadd.f32 %v195, %v287
  %289 = vmatmul.f32.gmra.mxu0 %v226
  %v290 = vpop.f32.mrf.mxu0
  %v291 = vadd.f32 %v195, %v290
  %292 = vmatmul.f32.gmra.mxu0 %v229
  %v293 = vpop.f32.mrf.mxu0
  %v294 = vadd.f32 %v195, %v293
  %295 = vmatmul.f32.gmra.mxu0 %v232
  %v296 = vpop.f32.mrf.mxu0
  %v297 = vadd.f32 %v195, %v296
  %298 = vmatmul.f32.gmra.mxu0 %v235
  %v299 = vpop.f32.mrf.mxu0
  %v300 = vadd.f32 %v195, %v299
  %301 = vmatmul.f32.gmra.mxu0 %v238
  %v302 = vpop.f32.mrf.mxu0
  %v303 = vadd.f32 %v195, %v302
  %304 = vmatmul.f32.gmra.mxu0 %v241
  %v305 = vpop.f32.mrf.mxu0
  %v306 = vadd.f32 %v195, %v305
  %307 = vmatmul.f32.gmra.mxu0 %v244
  %v308 = vpop.f32.mrf.mxu0
  %v309 = vadd.f32 %v195, %v308
  %310 = vdwg.mxu0
  %v311 = vmax.f32 %v264, 0.0
  %v312 = vmax.f32 %v267, 0.0
  %v313 = vmax.f32 %v270, 0.0
  %v314 = vmax.f32 %v273, 0.0
  %v315 = vmax.f32 %v276, 0.0
  %v316 = vmax.f32 %v279, 0.0
  %v317 = vmax.f32 %v282, 0.0
  %v318 = vmax.f32 %v285, 0.0
  %v319 = vmax.f32 %v288, 0.0
  %v320 = vmax.f32 %v291, 0.0
  %v321 = vmax.f32 %v294, 0.0
  %v322 = vmax.f32 %v297, 0.0
  %v323 = vmax.f32 %v300, 0.0
  %v324 = vmax.f32 %v303, 0.0
  %v325 = vmax.f32 %v306, 0.0
  %v326 = vmax.f32 %v309, 0.0
  %v327 = vld [vmem:[%s5] sm:$0x1]
  %v329 = vperm.slane %v327, 0
  %v331 = vmul.f32 %v311, %v329
  %v332 = vmul.f32 %v312, %v329
  %v333 = vmul.f32 %v313, %v329
  %v334 = vmul.f32 %v314, %v329
  %v335 = vmul.f32 %v315, %v329
  %v336 = vmul.f32 %v316, %v329
  %v337 = vmul.f32 %v317, %v329
  %v338 = vmul.f32 %v318, %v329
  %v339 = vmul.f32 %v319, %v329
  %v340 = vmul.f32 %v320, %v329
  %v341 = vmul.f32 %v321, %v329
  %v342 = vmul.f32 %v322, %v329
  %v343 = vmul.f32 %v323, %v329
  %v344 = vmul.f32 %v324, %v329
  %v345 = vmul.f32 %v325, %v329
  %v346 = vmul.f32 %v326, %v329
  %vm347 = vcmask 261120
  %v348 = vsel %vm347, %v331, 0.0
  %349 = vadd.xlane.f32.xlu0 %v348
  %v350 = vpop.xlane.xlu0 %349
  %v351 = vsel %vm347, %v332, 0.0
  %352 = vadd.xlane.f32.xlu0 %v351
  %v353 = vpop.xlane.xlu0 %352
  %v354 = vsel %vm347, %v333, 0.0
  %355 = vadd.xlane.f32.xlu0 %v354
  %v356 = vpop.xlane.xlu0 %355
  %v357 = vsel %vm347, %v334, 0.0
  %358 = vadd.xlane.f32.xlu0 %v357
  %v359 = vpop.xlane.xlu0 %358
  %v360 = vsel %vm347, %v335, 0.0
  %361 = vadd.xlane.f32.xlu0 %v360
  %v362 = vpop.xlane.xlu0 %361
  %v363 = vsel %vm347, %v336, 0.0
  %364 = vadd.xlane.f32.xlu0 %v363
  %v365 = vpop.xlane.xlu0 %364
  %v366 = vsel %vm347, %v337, 0.0
  %367 = vadd.xlane.f32.xlu0 %v366
  %v368 = vpop.xlane.xlu0 %367
  %v369 = vsel %vm347, %v338, 0.0
  %370 = vadd.xlane.f32.xlu0 %v369
  %v371 = vpop.xlane.xlu0 %370
  %v372 = vsel %vm347, %v339, 0.0
  %373 = vadd.xlane.f32.xlu0 %v372
  %v374 = vpop.xlane.xlu0 %373
  %v375 = vsel %vm347, %v340, 0.0
  %376 = vadd.xlane.f32.xlu0 %v375
  %v377 = vpop.xlane.xlu0 %376
  %v378 = vsel %vm347, %v341, 0.0
  %379 = vadd.xlane.f32.xlu0 %v378
  %v380 = vpop.xlane.xlu0 %379
  %v381 = vsel %vm347, %v342, 0.0
  %382 = vadd.xlane.f32.xlu0 %v381
  %v383 = vpop.xlane.xlu0 %382
  %v384 = vsel %vm347, %v343, 0.0
  %385 = vadd.xlane.f32.xlu0 %v384
  %v386 = vpop.xlane.xlu0 %385
  %v387 = vsel %vm347, %v344, 0.0
  %388 = vadd.xlane.f32.xlu0 %v387
  %v389 = vpop.xlane.xlu0 %388
  %v390 = vsel %vm347, %v345, 0.0
  %391 = vadd.xlane.f32.xlu0 %v390
  %v392 = vpop.xlane.xlu0 %391
  %v393 = vsel %vm347, %v346, 0.0
  %394 = vadd.xlane.f32.xlu0 %v393
  %v395 = vpop.xlane.xlu0 %394
  %v396 = vld [vmem:[#allocation2] sm:$0x1]
  %v398 = vperm.slane %v396, 0
  %v400 = vadd.f32 %v350, %v398
  %v401 = vadd.f32 %v353, %v398
  %v402 = vadd.f32 %v356, %v398
  %v403 = vadd.f32 %v359, %v398
  %v404 = vadd.f32 %v362, %v398
  %v405 = vadd.f32 %v365, %v398
  %v406 = vadd.f32 %v368, %v398
  %v407 = vadd.f32 %v371, %v398
  %v408 = vadd.f32 %v374, %v398
  %v409 = vadd.f32 %v377, %v398
  %v410 = vadd.f32 %v380, %v398
  %v411 = vadd.f32 %v383, %v398
  %v412 = vadd.f32 %v386, %v398
  %v413 = vadd.f32 %v389, %v398
  %v414 = vadd.f32 %v392, %v398
  %v415 = vadd.f32 %v395, %v398
  %v416 = vsub.f32 0.0, %v400
  %v417 = vsub.f32 0.0, %v401
  %v418 = vsub.f32 0.0, %v402
  %v419 = vsub.f32 0.0, %v403
  %v420 = vsub.f32 0.0, %v404
  %v421 = vsub.f32 0.0, %v405
  %v422 = vsub.f32 0.0, %v406
  %v423 = vsub.f32 0.0, %v407
  %v424 = vsub.f32 0.0, %v408
  %v425 = vsub.f32 0.0, %v409
  %v426 = vsub.f32 0.0, %v410
  %v427 = vsub.f32 0.0, %v411
  %v428 = vsub.f32 0.0, %v412
  %v429 = vsub.f32 0.0, %v413
  %v430 = vsub.f32 0.0, %v414
  %v431 = vsub.f32 0.0, %v415
  %v432 = vmul.f32 %v416, 1.442695
  %v433 = vpow.pop %v432
  %v434 = vmul.f32 %v417, 1.442695
  %v435 = vpow.pop %v434
  %v436 = vmul.f32 %v418, 1.442695
  %v437 = vpow.pop %v436
  %v438 = vmul.f32 %v419, 1.442695
  %v439 = vpow.pop %v438
  %v440 = vmul.f32 %v420, 1.442695
  %v441 = vpow.pop %v440
  %v442 = vmul.f32 %v421, 1.442695
  %v443 = vpow.pop %v442
  %v444 = vmul.f32 %v422, 1.442695
  %v445 = vpow.pop %v444
  %v446 = vmul.f32 %v423, 1.442695
  %v447 = vpow.pop %v446
  %v448 = vmul.f32 %v424, 1.442695
  %v449 = vpow.pop %v448
  %v450 = vmul.f32 %v425, 1.442695
  %v451 = vpow.pop %v450
  %v452 = vmul.f32 %v426, 1.442695
  %v453 = vpow.pop %v452
  %v454 = vmul.f32 %v427, 1.442695
  %v455 = vpow.pop %v454
  %v456 = vmul.f32 %v428, 1.442695
  %v457 = vpow.pop %v456
  %v458 = vmul.f32 %v429, 1.442695
  %v459 = vpow.pop %v458
  %v460 = vmul.f32 %v430, 1.442695
  %v461 = vpow.pop %v460
  %v462 = vmul.f32 %v431, 1.442695
  %v463 = vpow.pop %v462
  %v464 = vadd.f32 %v433, 1.0
  %v465 = vadd.f32 %v435, 1.0
  %v466 = vadd.f32 %v437, 1.0
  %v467 = vadd.f32 %v439, 1.0
  %v468 = vadd.f32 %v441, 1.0
  %v469 = vadd.f32 %v443, 1.0
  %v470 = vadd.f32 %v445, 1.0
  %v471 = vadd.f32 %v447, 1.0
  %v472 = vadd.f32 %v449, 1.0
  %v473 = vadd.f32 %v451, 1.0
  %v474 = vadd.f32 %v453, 1.0
  %v475 = vadd.f32 %v455, 1.0
  %v476 = vadd.f32 %v457, 1.0
  %v477 = vadd.f32 %v459, 1.0
  %v478 = vadd.f32 %v461, 1.0
  %v479 = vadd.f32 %v463, 1.0
  %v480 = vrcp.pop %v464
  %v481 = vmul.f32 %v464, %v480
  %v482 = vsub.f32 1.0, %v481
  %v483 = vmul.f32 %v480, %v482
  %v484 = vadd.f32 %v480, %v483
  %vm485 = vweird.f32 %v464
  %vm486 = vweird.f32 %v480
  %vm487 = vmor %vm485, %vm486
  %v488 = vsel %vm487, %v480, %v484
  %v489 = vand.u32 2147483647, %v464
  %vm490 = vcmp.eq.f32.partialorder %v489, 8.507059e+37
  %v491 = vand.u32 %v464, 2147483648
  %v492 = vor.u32 1.1754944e-38, %v491
  %v493 = vsel %vm490, %v492, %v488
  %v494 = vrcp.pop %v465
  %v495 = vmul.f32 %v465, %v494
  %v496 = vsub.f32 1.0, %v495
  %v497 = vmul.f32 %v494, %v496
  %v498 = vadd.f32 %v494, %v497
  %vm499 = vweird.f32 %v465
  %vm500 = vweird.f32 %v494
  %vm501 = vmor %vm499, %vm500
  %v502 = vsel %vm501, %v494, %v498
  %v503 = vand.u32 2147483647, %v465
  %vm504 = vcmp.eq.f32.partialorder %v503, 8.507059e+37
  %v505 = vand.u32 %v465, 2147483648
  %v506 = vor.u32 1.1754944e-38, %v505
  %v507 = vsel %vm504, %v506, %v502
  %v508 = vrcp.pop %v466
  %v509 = vmul.f32 %v466, %v508
  %v510 = vsub.f32 1.0, %v509
  %v511 = vmul.f32 %v508, %v510
  %v512 = vadd.f32 %v508, %v511
  %vm513 = vweird.f32 %v466
  %vm514 = vweird.f32 %v508
  %vm515 = vmor %vm513, %vm514
  %v516 = vsel %vm515, %v508, %v512
  %v517 = vand.u32 2147483647, %v466
  %vm518 = vcmp.eq.f32.partialorder %v517, 8.507059e+37
  %v519 = vand.u32 %v466, 2147483648
  %v520 = vor.u32 1.1754944e-38, %v519
  %v521 = vsel %vm518, %v520, %v516
  %v522 = vrcp.pop %v467
  %v523 = vmul.f32 %v467, %v522
  %v524 = vsub.f32 1.0, %v523
  %v525 = vmul.f32 %v522, %v524
  %v526 = vadd.f32 %v522, %v525
  %vm527 = vweird.f32 %v467
  %vm528 = vweird.f32 %v522
  %vm529 = vmor %vm527, %vm528
  %v530 = vsel %vm529, %v522, %v526
  %v531 = vand.u32 2147483647, %v467
  %vm532 = vcmp.eq.f32.partialorder %v531, 8.507059e+37
  %v533 = vand.u32 %v467, 2147483648
  %v534 = vor.u32 1.1754944e-38, %v533
  %v535 = vsel %vm532, %v534, %v530
  %v536 = vrcp.pop %v468
  %v537 = vmul.f32 %v468, %v536
  %v538 = vsub.f32 1.0, %v537
  %v539 = vmul.f32 %v536, %v538
  %v540 = vadd.f32 %v536, %v539
  %vm541 = vweird.f32 %v468
  %vm542 = vweird.f32 %v536
  %vm543 = vmor %vm541, %vm542
  %v544 = vsel %vm543, %v536, %v540
  %v545 = vand.u32 2147483647, %v468
  %vm546 = vcmp.eq.f32.partialorder %v545, 8.507059e+37
  %v547 = vand.u32 %v468, 2147483648
  %v548 = vor.u32 1.1754944e-38, %v547
  %v549 = vsel %vm546, %v548, %v544
  %v550 = vrcp.pop %v469
  %v551 = vmul.f32 %v469, %v550
  %v552 = vsub.f32 1.0, %v551
  %v553 = vmul.f32 %v550, %v552
  %v554 = vadd.f32 %v550, %v553
  %vm555 = vweird.f32 %v469
  %vm556 = vweird.f32 %v550
  %vm557 = vmor %vm555, %vm556
  %v558 = vsel %vm557, %v550, %v554
  %v559 = vand.u32 2147483647, %v469
  %vm560 = vcmp.eq.f32.partialorder %v559, 8.507059e+37
  %v561 = vand.u32 %v469, 2147483648
  %v562 = vor.u32 1.1754944e-38, %v561
  %v563 = vsel %vm560, %v562, %v558
  %v564 = vrcp.pop %v470
  %v565 = vmul.f32 %v470, %v564
  %v566 = vsub.f32 1.0, %v565
  %v567 = vmul.f32 %v564, %v566
  %v568 = vadd.f32 %v564, %v567
  %vm569 = vweird.f32 %v470
  %vm570 = vweird.f32 %v564
  %vm571 = vmor %vm569, %vm570
  %v572 = vsel %vm571, %v564, %v568
  %v573 = vand.u32 2147483647, %v470
  %vm574 = vcmp.eq.f32.partialorder %v573, 8.507059e+37
  %v575 = vand.u32 %v470, 2147483648
  %v576 = vor.u32 1.1754944e-38, %v575
  %v577 = vsel %vm574, %v576, %v572
  %v578 = vrcp.pop %v471
  %v579 = vmul.f32 %v471, %v578
  %v580 = vsub.f32 1.0, %v579
  %v581 = vmul.f32 %v578, %v580
  %v582 = vadd.f32 %v578, %v581
  %vm583 = vweird.f32 %v471
  %vm584 = vweird.f32 %v578
  %vm585 = vmor %vm583, %vm584
  %v586 = vsel %vm585, %v578, %v582
  %v587 = vand.u32 2147483647, %v471
  %vm588 = vcmp.eq.f32.partialorder %v587, 8.507059e+37
  %v589 = vand.u32 %v471, 2147483648
  %v590 = vor.u32 1.1754944e-38, %v589
  %v591 = vsel %vm588, %v590, %v586
  %v592 = vrcp.pop %v472
  %v593 = vmul.f32 %v472, %v592
  %v594 = vsub.f32 1.0, %v593
  %v595 = vmul.f32 %v592, %v594
  %v596 = vadd.f32 %v592, %v595
  %vm597 = vweird.f32 %v472
  %vm598 = vweird.f32 %v592
  %vm599 = vmor %vm597, %vm598
  %v600 = vsel %vm599, %v592, %v596
  %v601 = vand.u32 2147483647, %v472
  %vm602 = vcmp.eq.f32.partialorder %v601, 8.507059e+37
  %v603 = vand.u32 %v472, 2147483648
  %v604 = vor.u32 1.1754944e-38, %v603
  %v605 = vsel %vm602, %v604, %v600
  %v606 = vrcp.pop %v473
  %v607 = vmul.f32 %v473, %v606
  %v608 = vsub.f32 1.0, %v607
  %v609 = vmul.f32 %v606, %v608
  %v610 = vadd.f32 %v606, %v609
  %vm611 = vweird.f32 %v473
  %vm612 = vweird.f32 %v606
  %vm613 = vmor %vm611, %vm612
  %v614 = vsel %vm613, %v606, %v610
  %v615 = vand.u32 2147483647, %v473
  %vm616 = vcmp.eq.f32.partialorder %v615, 8.507059e+37
  %v617 = vand.u32 %v473, 2147483648
  %v618 = vor.u32 1.1754944e-38, %v617
  %v619 = vsel %vm616, %v618, %v614
  %v620 = vrcp.pop %v474
  %v621 = vmul.f32 %v474, %v620
  %v622 = vsub.f32 1.0, %v621
  %v623 = vmul.f32 %v620, %v622
  %v624 = vadd.f32 %v620, %v623
  %vm625 = vweird.f32 %v474
  %vm626 = vweird.f32 %v620
  %vm627 = vmor %vm625, %vm626
  %v628 = vsel %vm627, %v620, %v624
  %v629 = vand.u32 2147483647, %v474
  %vm630 = vcmp.eq.f32.partialorder %v629, 8.507059e+37
  %v631 = vand.u32 %v474, 2147483648
  %v632 = vor.u32 1.1754944e-38, %v631
  %v633 = vsel %vm630, %v632, %v628
  %v634 = vrcp.pop %v475
  %v635 = vmul.f32 %v475, %v634
  %v636 = vsub.f32 1.0, %v635
  %v637 = vmul.f32 %v634, %v636
  %v638 = vadd.f32 %v634, %v637
  %vm639 = vweird.f32 %v475
  %vm640 = vweird.f32 %v634
  %vm641 = vmor %vm639, %vm640
  %v642 = vsel %vm641, %v634, %v638
  %v643 = vand.u32 2147483647, %v475
  %vm644 = vcmp.eq.f32.partialorder %v643, 8.507059e+37
  %v645 = vand.u32 %v475, 2147483648
  %v646 = vor.u32 1.1754944e-38, %v645
  %v647 = vsel %vm644, %v646, %v642
  %v648 = vrcp.pop %v476
  %v649 = vmul.f32 %v476, %v648
  %v650 = vsub.f32 1.0, %v649
  %v651 = vmul.f32 %v648, %v650
  %v652 = vadd.f32 %v648, %v651
  %vm653 = vweird.f32 %v476
  %vm654 = vweird.f32 %v648
  %vm655 = vmor %vm653, %vm654
  %v656 = vsel %vm655, %v648, %v652
  %v657 = vand.u32 2147483647, %v476
  %vm658 = vcmp.eq.f32.partialorder %v657, 8.507059e+37
  %v659 = vand.u32 %v476, 2147483648
  %v660 = vor.u32 1.1754944e-38, %v659
  %v661 = vsel %vm658, %v660, %v656
  %v662 = vrcp.pop %v477
  %v663 = vmul.f32 %v477, %v662
  %v664 = vsub.f32 1.0, %v663
  %v665 = vmul.f32 %v662, %v664
  %v666 = vadd.f32 %v662, %v665
  %vm667 = vweird.f32 %v477
  %vm668 = vweird.f32 %v662
  %vm669 = vmor %vm667, %vm668
  %v670 = vsel %vm669, %v662, %v666
  %v671 = vand.u32 2147483647, %v477
  %vm672 = vcmp.eq.f32.partialorder %v671, 8.507059e+37
  %v673 = vand.u32 %v477, 2147483648
  %v674 = vor.u32 1.1754944e-38, %v673
  %v675 = vsel %vm672, %v674, %v670
  %v676 = vrcp.pop %v478
  %v677 = vmul.f32 %v478, %v676
  %v678 = vsub.f32 1.0, %v677
  %v679 = vmul.f32 %v676, %v678
  %v680 = vadd.f32 %v676, %v679
  %vm681 = vweird.f32 %v478
  %vm682 = vweird.f32 %v676
  %vm683 = vmor %vm681, %vm682
  %v684 = vsel %vm683, %v676, %v680
  %v685 = vand.u32 2147483647, %v478
  %vm686 = vcmp.eq.f32.partialorder %v685, 8.507059e+37
  %v687 = vand.u32 %v478, 2147483648
  %v688 = vor.u32 1.1754944e-38, %v687
  %v689 = vsel %vm686, %v688, %v684
  %v690 = vrcp.pop %v479
  %v691 = vmul.f32 %v479, %v690
  %v692 = vsub.f32 1.0, %v691
  %v693 = vmul.f32 %v690, %v692
  %v694 = vadd.f32 %v690, %v693
  %vm695 = vweird.f32 %v479
  %vm696 = vweird.f32 %v690
  %vm697 = vmor %vm695, %vm696
  %v698 = vsel %vm697, %v690, %v694
  %v699 = vand.u32 2147483647, %v479
  %vm700 = vcmp.eq.f32.partialorder %v699, 8.507059e+37
  %v701 = vand.u32 %v479, 2147483648
  %v702 = vor.u32 1.1754944e-38, %v701
  %v703 = vsel %vm700, %v702, %v698
  %vm704 = vcmask 7168
  %705 = vst.msk [vmem:[%s7] sm:$0xff] %vm704, %v493
  %706 = vst.msk [vmem:[%s7 + $0x8] sm:$0xff] %vm704, %v507
  %707 = vst.msk [vmem:[%s7 + $0x10] sm:$0xff] %vm704, %v521
  %708 = vst.msk [vmem:[%s7 + $0x18] sm:$0xff] %vm704, %v535
  %709 = vst.msk [vmem:[%s7 + $0x20] sm:$0xff] %vm704, %v549
  %710 = vst.msk [vmem:[%s7 + $0x28] sm:$0xff] %vm704, %v563
  %711 = vst.msk [vmem:[%s7 + $0x30] sm:$0xff] %vm704, %v577
  %712 = vst.msk [vmem:[%s7 + $0x38] sm:$0xff] %vm704, %v591
  %713 = vst.msk [vmem:[%s7 + $0x40] sm:$0xff] %vm704, %v605
  %714 = vst.msk [vmem:[%s7 + $0x48] sm:$0xff] %vm704, %v619
  %715 = vst.msk [vmem:[%s7 + $0x50] sm:$0xff] %vm704, %v633
  %716 = vst.msk [vmem:[%s7 + $0x58] sm:$0xff] %vm704, %v647
  %717 = vst.msk [vmem:[%s7 + $0x60] sm:$0xff] %vm704, %v661
  %718 = vst.msk [vmem:[%s7 + $0x68] sm:$0xff] %vm704, %v675
  %719 = vst.msk [vmem:[%s7 + $0x70] sm:$0xff] %vm704, %v689
  %720 = vst.msk [vmem:[%s7 + $0x78] sm:$0xff] %vm704, %v703
  // Predicated region
  $region30: #{simple_mlp_forward.1} parent=0 // pred_check
    _
  $region31: #{simple_mlp_forward.1} parent=0 // pred_check_branch
    %722 = sbr.rel (0) target = $region33
  $region32: #{simple_mlp_forward.1} parent=0 // pred_region
    _
  $region33: #{simple_mlp_forward.1} parent=0 // pred_fallthru
    _
  // Predicated region
  $region34: #{simple_mlp_forward.1} parent=0 // pred_check
    _
  $region35: #{simple_mlp_forward.1} parent=0 // pred_check_branch
    %724 = sbr.rel (0) target = $region37
  $region36: #{simple_mlp_forward.1} parent=0 // pred_region
    _
  $region37: #{simple_mlp_forward.1} parent=0 // pred_fallthru
    _

</llo_original>
